<compile_context>
chip_gen: v7x
topology: tpu7x:2x2x1
jax: 0.10.0
libtpu: 0.0.40
codegen_flags: <defaults>
</compile_context>

<pallas_src>
import functools

import jax
import jax.numpy as jnp
from jax.experimental import pallas as pl
from jax.experimental.pallas import tpu as pltpu


def _round_up(x, m):
    return ((x + m - 1) // m) * m


def _pick_tiles(b, n, dtype):
    """Pick (TILE_B, TILE_N, vmem_cap): TILE_B % sublane == 0, TILE_N % 128 == 0."""
    itemsize = jnp.dtype(dtype).itemsize
    sub = max(8, 32 // itemsize)  # sublane multiple: 8 f32, 16 bf16, 32 int8/fp8
    try:
        vmem_cap = int(pltpu.get_tpu_info().vmem_capacity_bytes)
    except Exception:
        vmem_cap = 64 << 20  # conservative (v7x-sized) fallback
    # Per pred-tile byte budget (x2 for double buffering); leaves room for the
    # lane-padded (TB, 1) target/output blocks and compiler scratch.
    budget = max(4 << 20, min(16 << 20, vmem_cap // 8))

    n_pad = _round_up(n, 128)
    b_sub = _round_up(b, sub)
    # Let tile_b grow past 256 when N is small so the tile still amortizes the
    # ~0.35 us per-grid-step overhead; cap it so the lane-padded (TB, 1)
    # target/output blocks stay modest.
    rows_fit = max(sub, (budget // (n_pad * itemsize)) // sub * sub)
    tile_b = max(sub, min(b_sub, rows_fit, 8192))
    tile_n = max(128, (budget // (tile_b * itemsize)) // 128 * 128)
    tile_n = min(n_pad, tile_n)
    return tile_b, tile_n, vmem_cap


def _label_smooth_loss_kernel(target_ref, pred_ref, out_ref, *,
                              tile_n, neg_smooth, neg_conf):
    # target_ref: [TB, 1] int32 ; pred_ref: [TB, TN] float (log-softmax values)
    # out_ref:    [TB, 1] f32   -- per-row loss, resident across label tiles.
    j = pl.program_id(1)  # label-tile index (reduction axis, last)

    @pl.when(j == 0)
    def _init():
        out_ref[...] = jnp.zeros_like(out_ref)

    pred = pred_ref[...].astype(jnp.float32)                   # [TB, TN]
    tgt_local = target_ref[...] - j * tile_n                   # [TB, 1] int32
    col_ids = jax.lax.broadcasted_iota(jnp.int32, pred.shape, 1)
    # Negated true_dist weights folded into the select constants (free).
    w = jnp.where(col_ids == tgt_local,
                  jnp.float32(neg_conf), jnp.float32(neg_smooth))
    # Per-row partial loss for this label tile; plain VPU accumulate in VMEM.
    out_ref[...] += jnp.sum(pred * w, axis=1, keepdims=True)


def label_smooth_loss(target, pred, *, num_labels, smoothing=0.2):
    """target: int [B]; pred: float [B, N] log-softmax. Returns scalar f32."""
    confidence = 1.0 - smoothing
    b, n = pred.shape
    assert n == num_labels

    smooth_val = smoothing / num_labels
    inv_b = 1.0 / b

    tile_b, tile_n, vmem_cap = _pick_tiles(b, n, pred.dtype)
    b_pad = _round_up(b, tile_b)
    n_pad = _round_up(n, tile_n)

    target_2d = target.astype(jnp.int32).reshape(b, 1)
    if b_pad != b or n_pad != n:
        # Zero padding is exact: padded pred rows/cols contribute 0 to the
        # weighted sum regardless of the (constant) weights.
        pred = jnp.pad(pred, ((0, b_pad - b), (0, n_pad - n)))
        target_2d = jnp.pad(target_2d, ((0, b_pad - b), (0, 0)))

    grid = (b_pad // tile_b, n_pad // tile_n)

    kernel = functools.partial(
        _label_smooth_loss_kernel,
        tile_n=tile_n,
        neg_smooth=-smooth_val,
        neg_conf=-confidence,
    )

    itemsize = jnp.dtype(pred.dtype).itemsize
    # pred double-buffered + lane-padded (TB,1) target/output blocks (2x each).
    vmem_need = 2 * tile_b * tile_n * itemsize + 4 * tile_b * 128 * 4
    # Clamp to the chip's physical VMEM minus headroom (v7x = 64 MiB).
    vmem_limit = int(min(max(vmem_need + (8 << 20), 32 << 20),
                         vmem_cap - (4 << 20)))

    rows = pl.pallas_call(
        kernel,
        out_shape=jax.ShapeDtypeStruct((b_pad, 1), jnp.float32),
        grid_spec=pltpu.PrefetchScalarGridSpec(
            num_scalar_prefetch=0,
            grid=grid,
            in_specs=[
                # target: indexed by batch tile only (not re-fetched per label tile)
                pl.BlockSpec((tile_b, 1), lambda i, j: (i, 0)),
                # pred: streamed (TILE_B, TILE_N) tiles, auto double-buffered
                pl.BlockSpec((tile_b, tile_n), lambda i, j: (i, j)),
            ],
            # Per-row partial losses, resident across the label (reduction) axis.
            out_specs=pl.BlockSpec((tile_b, 1), lambda i, j: (i, 0)),
        ),
        compiler_params=pltpu.CompilerParams(
            # Batch tiles are independent -> "parallel" (sharded across TCs on
            # v7x); label axis carries the resident accumulator -> "arbitrary".
            dimension_semantics=("parallel", "arbitrary"),
            vmem_limit_bytes=vmem_limit,
        ),
    )(target_2d, pred)

    # Padded rows contribute exactly 0; mean uses the original batch size.
    return jnp.sum(rows) * jnp.float32(inv_b)


def _reference(target, pred, *, num_labels, smoothing=0.2):
    confidence = 1.0 - smoothing
    b, n = pred.shape
    true_dist = jnp.full((b, n), smoothing / num_labels, dtype=jnp.float32)
    true_dist = true_dist.at[jnp.arange(b), target].set(confidence)
    return jnp.mean(jnp.sum(-true_dist * pred.astype(jnp.float32), axis=-1))


if __name__ == "__main__":
    key = jax.random.PRNGKey(0)
    smoothing = 0.2
    k1, k2, k3, k4 = jax.random.split(key, 4)

    # Case 1: tiny shapes matching the module contract.
    b, num_labels = 8, 32
    logits = jax.random.normal(k1, (b, num_labels), dtype=jnp.float32)
    pred = jax.nn.log_softmax(logits, axis=-1)                 # [B, N] log-softmax
    target = jax.random.randint(k2, (b,), 0, num_labels)       # [B]
    loss = jax.block_until_ready(
        label_smooth_loss(target, pred, num_labels=num_labels, smoothing=smoothing))
    ref = _reference(target, pred, num_labels=num_labels, smoothing=smoothing)
    assert jnp.allclose(loss, ref, atol=1e-5, rtol=1e-5), (loss, ref)

    # Case 2: non-multiple shapes to exercise batch/label zero-padding.
    b2, n2 = 24, 200
    logits2 = jax.random.normal(k3, (b2, n2), dtype=jnp.float32)
    pred2 = jax.nn.log_softmax(logits2, axis=-1)
    target2 = jax.random.randint(k4, (b2,), 0, n2)
    loss2 = jax.block_until_ready(
        label_smooth_loss(target2, pred2, num_labels=n2, smoothing=smoothing))
    ref2 = _reference(target2, pred2, num_labels=n2, smoothing=smoothing)
    assert jnp.allclose(loss2, ref2, atol=1e-5, rtol=1e-5), (loss2, ref2)

    print("KERNEL_OK")
</pallas_src>

<mosaic_0001>
module attributes {stable_mosaic.version = 11 : i64} {
  func.func @_label_smooth_loss_kernel(%arg0: i32, %arg1: i32, %arg2: memref<8x1xi32, #tpu.memory_space<vmem>>, %arg3: memref<8x128xf32, #tpu.memory_space<vmem>>, %arg4: memref<8x1xf32, #tpu.memory_space<vmem>>) attributes {dimension_semantics = [#tpu.dimension_semantics<parallel>, #tpu.dimension_semantics<arbitrary>], iteration_bounds = array<i64: 1, 1>, scalar_prefetch = 0 : i64, scratch_operands = 0 : i64, tpu.core_type = #tpu.core_type<tc>, window_params = [{transform_indices = @transform_0, window_bounds = array<i64: 8, 1>}, {transform_indices = @transform_1, window_bounds = array<i64: 8, 128>}, {transform_indices = @transform_2, window_bounds = array<i64: 8, 1>}]} {
    %c0_i32 = arith.constant 0 : i32
    %0 = arith.cmpi eq, %arg1, %c0_i32 : i32
    %1 = arith.extui %0 : i1 to i32
    %c0_i32_0 = arith.constant 0 : i32
    %2 = arith.cmpi ne, %1, %c0_i32_0 : i32
    scf.if %2 {
      %cst_10 = arith.constant 0.000000e+00 : f32
      %20 = vector.broadcast %cst_10 : f32 to vector<8x1xf32>
      %c0_11 = arith.constant 0 : index
      %c0_12 = arith.constant 0 : index
      %21 = vector.load %arg4[%c0_11, %c0_12] : memref<8x1xf32, #tpu.memory_space<vmem>>, vector<8x1xf32>
      tpu.vector_store %arg4[%c0_11, %c0_12], %20 {strides = array<i32>} : memref<8x1xf32, #tpu.memory_space<vmem>>, vector<8x1xf32>,
    } else {
    }
    %c0 = arith.constant 0 : index
    %c0_1 = arith.constant 0 : index
    %3 = vector.load %arg3[%c0, %c0_1] : memref<8x128xf32, #tpu.memory_space<vmem>>, vector<8x128xf32>
    %c0_2 = arith.constant 0 : index
    %c0_3 = arith.constant 0 : index
    %4 = vector.load %arg2[%c0_2, %c0_3] : memref<8x1xi32, #tpu.memory_space<vmem>>, vector<8x1xi32>
    %c128_i32 = arith.constant 128 : i32
    %5 = arith.muli %arg1, %c128_i32 : i32
    %6 = vector.broadcast %5 : i32 to vector<8x1xi32>
    %7 = arith.subi %4, %6 : vector<8x1xi32>
    %8 = tpu.iota {dimensions = array<i32: 1>} : vector<8x128xi32>
    %9 = vector.broadcast %7 : vector<8x1xi32> to vector<8x128xi32>
    %10 = arith.cmpi eq, %8, %9 : vector<8x128xi32>
    %cst = arith.constant -8.000000e-01 : f32
    %cst_4 = arith.constant -6.250000e-03 : f32
    %11 = vector.broadcast %cst : f32 to vector<8x128xf32>
    %12 = vector.broadcast %cst_4 : f32 to vector<8x128xf32>
    %13 = arith.select %10, %11, %12 : vector<8x128xi1>, vector<8x128xf32>
    %c0_5 = arith.constant 0 : index
    %c0_6 = arith.constant 0 : index
    %14 = vector.load %arg4[%c0_5, %c0_6] : memref<8x1xf32, #tpu.memory_space<vmem>>, vector<8x1xf32>
    %15 = arith.mulf %3, %13 : vector<8x128xf32>
    %cst_7 = arith.constant dense<0.000000e+00> : vector<8xf32>
    %16 = vector.multi_reduction <add>, %15, %cst_7 [1] : vector<8x128xf32> to vector<8xf32>
    %17 = vector.shape_cast %16 : vector<8xf32> to vector<8x1xf32>
    %18 = arith.addf %14, %17 : vector<8x1xf32>
    %c0_8 = arith.constant 0 : index
    %c0_9 = arith.constant 0 : index
    %19 = vector.load %arg4[%c0_8, %c0_9] : memref<8x1xf32, #tpu.memory_space<vmem>>, vector<8x1xf32>
    tpu.vector_store %arg4[%c0_8, %c0_9], %18 {strides = array<i32>} : memref<8x1xf32, #tpu.memory_space<vmem>>, vector<8x1xf32>,
    return
  }
  func.func @transform_0(%arg0: i32, %arg1: i32) -> (i32, i32) {
    %c0_i32 = arith.constant 0 : i32
    %c0_i32_0 = arith.constant 0 : i32
    return %arg0, %c0_i32 : i32, i32
  }
  func.func @transform_1(%arg0: i32, %arg1: i32) -> (i32, i32) {
    %c0_i32 = arith.constant 0 : i32
    return %arg0, %arg1 : i32, i32
  }
  func.func @transform_2(%arg0: i32, %arg1: i32) -> (i32, i32) {
    %c0_i32 = arith.constant 0 : i32
    %c0_i32_0 = arith.constant 0 : i32
    return %arg0, %c0_i32 : i32, i32
  }
}

</mosaic_0001>

<llo_original>
// kernel: tpu_custom_call.1
$region0: #{tpu_custom_call.1}
  #allocation0 [shape = 'u32[]', space=smem, size = 0x4, offset = 0x4, fixed_abs, tag = 'smem constant byte address 0x4 - core index']
  #allocation1 [shape = 'u32[144,128]{1,0:T(1,128)}', space=vmem, size = 0x12000, scoped, tag = 'internal scratch']
  %s0 = inlined_call_operand.vmem [shape: s32[8,1], index: 0, kind: input, shape index: {}]
  %s1 = inlined_call_operand.vmem [shape: f32[8,128], index: 1, kind: input, shape index: {}]
  %s2 = inlined_call_operand.vmem [shape: f32[8,1], index: 2, kind: output, shape index: {}]
  %s3 = sld [smem:[#allocation0]]
  $region22: #{tpu_custom_call.1} parent=0
    _
  %s5 = ssub.s32 1, %s3
  %s6 = scalar_select 0, %s5, %s3
  // Predicated region
  $region2: #{tpu_custom_call.1} parent=0 // pred_check
    _
  $region3: #{tpu_custom_call.1} parent=0 // pred_check_branch
    %8 = sbr.rel (0) target = $region5
  $region4: #{tpu_custom_call.1} parent=0 // pred_region
    _
  $region5: #{tpu_custom_call.1} parent=0 // pred_fallthru
    _
  // Predicated region
  $region6: #{tpu_custom_call.1} parent=0 // pred_check
    _
  $region7: #{tpu_custom_call.1} parent=0 // pred_check_branch
    %10 = sbr.rel (0) target = $region9
  $region8: #{tpu_custom_call.1} parent=0 // pred_region
    _
  $region9: #{tpu_custom_call.1} parent=0 // pred_fallthru
    _
  %p11 = scmp.eq.s32.totalorder 0, 0
  // Predicated region
  $region10: #{tpu_custom_call.1} parent=0 // pred_check
    %p12 = pneg %p11
  $region11: #{tpu_custom_call.1} parent=0 // pred_check_branch
    %14 = sbr.rel (%p12) target = $region13
  $region12: #{tpu_custom_call.1} parent=0 // pred_region
    %vm15 = vcmask 7168
    %16 = vst.msk [vmem:[%s2] sm:$0xff] %vm15, 0.0
  $region13: #{tpu_custom_call.1} parent=0 // pred_fallthru
    _
  %v17 = vld [vmem:[%s1] sm:$0xff]
  %v18 = vld [vmem:[%s0] sm:$0xff]
  %s19 = smul.u32 0, 128
  %v20 = vstv %s19
  %v21 = vsub.s32 %v18, %v20
  %v22 = vlaneseq
  %v23 = vand.u32 %v22, 127
  %24 = vset.pattern.permute.xlu0 0
  %25 = vperm.xlu0 %24, %v21
  %v26 = vpop.permute.xlu0 %25
  %vm27 = vcmp.eq.s32.totalorder %v23, %v26
  %v28 = vsel %vm27, -0.8, -0.00625
  %v29 = vld [vmem:[%s2] sm:$0xff]
  %v30 = vmul.f32 %v17, %v28
  %31 = vadd.xlane.f32.xlu0 %v30
  %v32 = vpop.xlane.xlu0 %31
  %v33 = vadd.f32 %v29, %v32
  %vm34 = vcmask 7168
  %35 = vst.msk [vmem:[%s2] sm:$0xff] %vm34, %v33
  // Predicated region
  $region14: #{tpu_custom_call.1} parent=0 // pred_check
    _
  $region15: #{tpu_custom_call.1} parent=0 // pred_check_branch
    %37 = sbr.rel (0) target = $region17
  $region16: #{tpu_custom_call.1} parent=0 // pred_region
    _
  $region17: #{tpu_custom_call.1} parent=0 // pred_fallthru
    _
  // Predicated region
  $region18: #{tpu_custom_call.1} parent=0 // pred_check
    _
  $region19: #{tpu_custom_call.1} parent=0 // pred_check_branch
    %39 = sbr.rel (0) target = $region21
  $region20: #{tpu_custom_call.1} parent=0 // pred_region
    _
  $region21: #{tpu_custom_call.1} parent=0 // pred_fallthru
    _

</llo_original>
